<compile_context>
chip_gen: v7x
topology: tpu7x:2x2x1
jax: 0.10.0
libtpu: 0.0.40
codegen_flags: <defaults>
</compile_context>

<pallas_src>
import functools

import jax
import jax.numpy as jnp
from jax import lax
from jax.experimental import pallas as pl
from jax.experimental.pallas import tpu as pltpu

EPS = 1e-5
NEG_SLOPE = 0.2


# ---------------------------------------------------------------------------
# Kernels
# ---------------------------------------------------------------------------
def _matmul_stats_kernel(p_ref, w_ref, y_ref, sum_ref, sq_ref):
    """Pass 1: y = patches @ W (f32 acc, no bias); accumulate channel sum/sumsq.

    p_ref:   (TM, Kp)    bf16 im2col patches tile
    w_ref:   (Kp, Np)    bf16 flattened conv weights (resident)
    y_ref:   (TM, Np)    f32 pre-BN activations (written to HBM per tile)
    sum_ref: (1, 1, Np)  f32 per-stripe running channel sum   (resident on axis 1)
    sq_ref:  (1, 1, Np)  f32 per-stripe running channel sumsq (resident on axis 1)
    """
    y = jnp.dot(p_ref[...], w_ref[...], preferred_element_type=jnp.float32)
    y_ref[...] = y

    @pl.when(pl.program_id(1) == 0)
    def _():
        sum_ref[...] = jnp.zeros_like(sum_ref)
        sq_ref[...] = jnp.zeros_like(sq_ref)

    sum_ref[...] += jnp.sum(y, axis=0).reshape(sum_ref.shape)
    sq_ref[...] += jnp.sum(y * y, axis=0).reshape(sq_ref.shape)


def _scale_shift_lrelu_kernel(y_ref, scale_ref, shift_ref, o_ref):
    """Pass 2: per-channel affine (folded BN, bias absorbed) + LeakyReLU(0.2)."""
    z = y_ref[...] * scale_ref[...] + shift_ref[...]
    o_ref[...] = jnp.where(z >= 0, z, NEG_SLOPE * z)


def _matmul_bias_lrelu_kernel(p_ref, w_ref, b_ref, o_ref):
    """with_bn=False path: conv (as matmul) + bias + LeakyReLU, single pass."""
    y = jnp.dot(p_ref[...], w_ref[...], preferred_element_type=jnp.float32)
    y = y + b_ref[...]
    o_ref[...] = jnp.where(y >= 0, y, NEG_SLOPE * y)


# ---------------------------------------------------------------------------
# Helpers
# ---------------------------------------------------------------------------
def _round_up(x, m):
    return ((x + m - 1) // m) * m


def _vmem_capacity_bytes():
    try:
        return int(pltpu.get_tpu_info().vmem_capacity_bytes)
    except Exception:
        return 64 * 1024 * 1024  # conservative fallback (v7x per-TC VMEM)


def _pick_tile_m(M, Kp, Np, vmem_cap):
    """Largest M-tile that fits the per-generation VMEM budget."""
    budget = int(vmem_cap * 0.55)
    # Resident: double-buffered bf16 weights + small per-channel vectors.
    resident = 2 * Kp * Np * 2 + 16 * Np * 4
    # Per row: 2x bf16 patch bufs + 2x f32 y bufs + ~2 rows of f32 temps.
    per_row = 2 * (Kp * 2) + 2 * (Np * 4) + 2 * (Np * 4)
    tm = (budget - resident) // max(per_row, 1)
    tm = int(max(256, min(2048, tm)))   # ~256-512 on v7x/v5e, up to 2048 on v6e
    tm -= tm % 256
    tm = min(tm, _round_up(M, 8))       # never larger than the (padded) problem
    return max(tm, 8)


def _im2col_nhwc(x_nhwc, ksize, stride, pad):
    N, H, W, C = x_nhwc.shape
    xp = jnp.pad(x_nhwc, ((0, 0), (pad, pad), (pad, pad), (0, 0)))
    Ho = (H + 2 * pad - ksize) // stride + 1
    Wo = (W + 2 * pad - ksize) // stride + 1
    cols = []
    for kh in range(ksize):
        for kw in range(ksize):
            cols.append(
                xp[:, kh:kh + Ho * stride:stride, kw:kw + Wo * stride:stride, :]
            )
    # (N, Ho, Wo, kh*kw, C) -> (M, kh*kw*C); K ordering = (kh, kw, c)
    patches = jnp.stack(cols, axis=3)
    return patches.reshape(N * Ho * Wo, ksize * ksize * C), Ho, Wo


# ---------------------------------------------------------------------------
# Forward
# ---------------------------------------------------------------------------
@functools.partial(jax.jit, static_argnames=("stride", "with_bn", "tile_m"))
def conv_block_forward(x_nchw, weight, bias, gamma=None, beta=None, *,
                       stride=1, with_bn=True, tile_m=None):
    """ConvBlock forward.  x_nchw: (N, Cin, H, W); weight: (Cout, Cin, 3, 3)."""
    N, Cin, H, W = x_nchw.shape
    Cout = weight.shape[0]
    K = 3

    # Cast to bf16 BEFORE im2col: halves the 9x-amplified patches intermediate.
    x_nhwc = jnp.transpose(x_nchw.astype(jnp.bfloat16), (0, 2, 3, 1))
    # TODO(synk): replace wrapper-side im2col with in-kernel 9-tap accumulation
    # (DMA NHWC row bands) to eliminate the 9x HBM amplification entirely.
    patches, Ho, Wo = _im2col_nhwc(x_nhwc, K, stride, pad=1)
    M, Kdim = patches.shape

    # Lane padding to 128 (the compiler splits the resident Kp x Np weights
    # into MXU passes regardless of MXU width).
    Kp = _round_up(max(Kdim, 128), 128)
    Np = _round_up(max(Cout, 128), 128)

    # bf16 MXU inputs (f32 accumulation via preferred_element_type).
    w_flat = jnp.transpose(weight, (2, 3, 1, 0)).reshape(K * K * Cin, Cout)
    w_p = jnp.pad(w_flat.astype(jnp.bfloat16), ((0, Kp - Kdim), (0, Np - Cout)))
    b_p = jnp.pad(bias.astype(jnp.float32), (0, Np - Cout)).reshape(1, Np)

    vmem_cap = _vmem_capacity_bytes()
    TM = tile_m if tile_m is not None else _pick_tile_m(M, Kp, Np, vmem_cap)
    vmem_limit = min(int(vmem_cap * 0.85), 100 * 1024 * 1024)

    if with_bn:
        # Split the M axis into NC stripes: "parallel" outer grid axis shards
        # the stats pass across TensorCores on multi-TC chips (v7x).
        NC = 2 if M >= 2 * TM else 1
        Mp = _round_up(M, NC * TM)
        tiles_per_core = Mp // (NC * TM)
        patches_p = jnp.pad(patches, ((0, Mp - M), (0, Kp - Kdim)))

        # ---- Pass 1: matmul (no bias: it cancels under BN), channel stats. ----
        # Zero-padded patch rows contribute exactly 0 to sum/sumsq -> no
        # correction needed.
        y_p, ch_sum, ch_sq = pl.pallas_call(
            _matmul_stats_kernel,
            out_shape=(
                jax.ShapeDtypeStruct((Mp, Np), jnp.float32),
                jax.ShapeDtypeStruct((NC, 1, Np), jnp.float32),
                jax.ShapeDtypeStruct((NC, 1, Np), jnp.float32),
            ),
            grid=(NC, tiles_per_core),
            in_specs=[
                pl.BlockSpec((TM, Kp), lambda c, i: (c * tiles_per_core + i, 0)),
                pl.BlockSpec((Kp, Np), lambda c, i: (0, 0)),
            ],
            out_specs=(
                pl.BlockSpec((TM, Np), lambda c, i: (c * tiles_per_core + i, 0)),
                pl.BlockSpec((1, 1, Np), lambda c, i: (c, 0, 0)),
                pl.BlockSpec((1, 1, Np), lambda c, i: (c, 0, 0)),
            ),
            compiler_params=pltpu.CompilerParams(
                dimension_semantics=("parallel", "arbitrary"),
                vmem_limit_bytes=vmem_limit,
            ),
        )(patches_p, w_p)

        # Reduce per-stripe partial stats; fold conv bias + BN into scale/shift.
        s = jnp.sum(ch_sum[:, 0, :], axis=0)          # (Np,)
        sq = jnp.sum(ch_sq[:, 0, :], axis=0)
        mean = s / M
        var = jnp.maximum(sq / M - mean * mean, 0.0)   # biased var, clamped
        inv_std = lax.rsqrt(var + EPS)
        gamma_p = jnp.pad(gamma.astype(jnp.float32), (0, Np - Cout))
        beta_p = jnp.pad(beta.astype(jnp.float32), (0, Np - Cout))
        scale = (gamma_p * inv_std).reshape(1, Np)
        # Bias cancels: BN(y + b) == gamma*(y - mean(y))*inv_std + beta.
        shift = (beta_p - mean * gamma_p * inv_std).reshape(1, Np)

        # ---- Pass 2: normalize + LeakyReLU, fully parallel over M-tiles. ----
        out_p = pl.pallas_call(
            _scale_shift_lrelu_kernel,
            out_shape=jax.ShapeDtypeStruct((Mp, Np), jnp.float32),
            grid=(Mp // TM,),
            in_specs=[
                pl.BlockSpec((TM, Np), lambda i: (i, 0)),
                pl.BlockSpec((1, Np), lambda i: (0, 0)),
                pl.BlockSpec((1, Np), lambda i: (0, 0)),
            ],
            out_specs=pl.BlockSpec((TM, Np), lambda i: (i, 0)),
            compiler_params=pltpu.CompilerParams(
                dimension_semantics=("parallel",),
                vmem_limit_bytes=vmem_limit,
            ),
        )(y_p, scale, shift)
    else:
        # No BN: single fused matmul + bias + LeakyReLU (exact semantics).
        Mp = _round_up(M, TM)
        patches_p = jnp.pad(patches, ((0, Mp - M), (0, Kp - Kdim)))
        out_p = pl.pallas_call(
            _matmul_bias_lrelu_kernel,
            out_shape=jax.ShapeDtypeStruct((Mp, Np), jnp.float32),
            grid=(Mp // TM,),
            in_specs=[
                pl.BlockSpec((TM, Kp), lambda i: (i, 0)),
                pl.BlockSpec((Kp, Np), lambda i: (0, 0)),
                pl.BlockSpec((1, Np), lambda i: (0, 0)),
            ],
            out_specs=pl.BlockSpec((TM, Np), lambda i: (i, 0)),
            compiler_params=pltpu.CompilerParams(
                dimension_semantics=("parallel",),
                vmem_limit_bytes=vmem_limit,
            ),
        )(patches_p, w_p, b_p)

    out = out_p[:M, :Cout].reshape(N, Ho, Wo, Cout)     # NHWC
    # TODO(synk): NHWC-consuming callers should take `out` directly; the
    # transpose below exists only for PyTorch NCHW parity.
    return jnp.transpose(out, (0, 3, 1, 2))


# ---------------------------------------------------------------------------
# Pure-JAX reference (conv + training-mode BN + LeakyReLU)
# ---------------------------------------------------------------------------
def _reference(x_nchw, weight, bias, gamma, beta, stride, with_bn):
    y = lax.conv_general_dilated(
        x_nchw.astype(jnp.float32), weight.astype(jnp.float32),
        window_strides=(stride, stride), padding=((1, 1), (1, 1)),
        dimension_numbers=("NCHW", "OIHW", "NCHW"),
    ) + bias.reshape(1, -1, 1, 1)
    if with_bn:
        mean = jnp.mean(y, axis=(0, 2, 3), keepdims=True)
        var = jnp.mean((y - mean) ** 2, axis=(0, 2, 3), keepdims=True)
        y = gamma.reshape(1, -1, 1, 1) * (y - mean) * lax.rsqrt(var + EPS) \
            + beta.reshape(1, -1, 1, 1)
    return jnp.where(y >= 0, y, NEG_SLOPE * y)


if __name__ == "__main__":
    key = jax.random.PRNGKey(0)
    k_x, k_w, k_b, k_g, k_beta, k_x2, k_w2, k_b2 = jax.random.split(key, 8)

    # Case 1: stride=1, with_bn=True.  tile_m=128 forces 4 M-tiles (2 stripes x
    # 2 tiles) so both the cross-tile and cross-stripe stats paths run.
    N, Cin, H, W, Cout = 2, 4, 16, 16, 8
    x = jax.random.normal(k_x, (N, Cin, H, W), dtype=jnp.float32)
    w = 0.1 * jax.random.normal(k_w, (Cout, Cin, 3, 3), dtype=jnp.float32)
    b = 0.1 * jax.random.normal(k_b, (Cout,), dtype=jnp.float32)
    g = 1.0 + 0.1 * jax.random.normal(k_g, (Cout,), dtype=jnp.float32)
    be = 0.1 * jax.random.normal(k_beta, (Cout,), dtype=jnp.float32)

    out1 = jax.block_until_ready(
        conv_block_forward(x, w, b, g, be, stride=1, with_bn=True, tile_m=128))
    ref1 = _reference(x, w, b, g, be, 1, True)
    assert out1.shape == ref1.shape == (N, Cout, H, W)
    err1 = float(jnp.max(jnp.abs(out1 - ref1)))
    assert err1 < 2e-2, f"case1 max abs err {err1}"   # bf16 MXU inputs -> looser tol

    # Case 2: stride=2, with_bn=False (exact no-BN path), auto tile size.
    out2 = jax.block_until_ready(
        conv_block_forward(x, w, b, stride=2, with_bn=False))
    ref2 = _reference(x, w, b, None, None, 2, False)
    assert out2.shape == ref2.shape == (N, Cout, H // 2, W // 2)
    err2 = float(jnp.max(jnp.abs(out2 - ref2)))
    assert err2 < 2e-2, f"case2 max abs err {err2}"

    # Case 3: odd shapes so M is not a tile multiple (exercises zero-padded
    # rows; with the bias-free stats pass they need no correction).
    N3, Cin3, H3, W3, Cout3 = 1, 3, 7, 7, 5
    x3 = jax.random.normal(k_x2, (N3, Cin3, H3, W3), dtype=jnp.float32)
    w3 = 0.1 * jax.random.normal(k_w2, (Cout3, Cin3, 3, 3), dtype=jnp.float32)
    b3 = 0.1 * jax.random.normal(k_b2, (Cout3,), dtype=jnp.float32)
    g3 = jnp.ones((Cout3,), jnp.float32)
    be3 = jnp.zeros((Cout3,), jnp.float32)
    out3 = jax.block_until_ready(
        conv_block_forward(x3, w3, b3, g3, be3, stride=1, with_bn=True, tile_m=32))
    ref3 = _reference(x3, w3, b3, g3, be3, 1, True)
    assert out3.shape == ref3.shape == (N3, Cout3, H3, W3)
    err3 = float(jnp.max(jnp.abs(out3 - ref3)))
    assert err3 < 2e-2, f"case3 max abs err {err3}"

    print("KERNEL_OK")
</pallas_src>

<mosaic_0001>
module attributes {stable_mosaic.version = 11 : i64} {
  func.func @_matmul_stats_kernel(%arg0: i32, %arg1: i32, %arg2: memref<128x128xbf16, #tpu.memory_space<vmem>>, %arg3: memref<128x128xbf16, #tpu.memory_space<vmem>>, %arg4: memref<128x128xf32, #tpu.memory_space<vmem>>, %arg5: memref<1x1x128xf32, #tpu.memory_space<vmem>>, %arg6: memref<1x1x128xf32, #tpu.memory_space<vmem>>) attributes {dimension_semantics = [#tpu.dimension_semantics<parallel>, #tpu.dimension_semantics<arbitrary>], iteration_bounds = array<i64: 2, 2>, scalar_prefetch = 0 : i64, scratch_operands = 0 : i64, tpu.core_type = #tpu.core_type<tc>, window_params = [{transform_indices = @transform_0, window_bounds = array<i64: 128, 128>}, {pipeline_mode = #tpu.pipeline_mode<synchronous>, transform_indices = @transform_1, window_bounds = array<i64: 128, 128>}, {transform_indices = @transform_2, window_bounds = array<i64: 128, 128>}, {transform_indices = @transform_3, window_bounds = array<i64: 1, 1, 128>}, {transform_indices = @transform_4, window_bounds = array<i64: 1, 1, 128>}]} {
    %c0 = arith.constant 0 : index
    %c0_0 = arith.constant 0 : index
    %0 = vector.load %arg2[%c0, %c0_0] : memref<128x128xbf16, #tpu.memory_space<vmem>>, vector<128x128xbf16>
    %c0_1 = arith.constant 0 : index
    %c0_2 = arith.constant 0 : index
    %1 = vector.load %arg3[%c0_1, %c0_2] : memref<128x128xbf16, #tpu.memory_space<vmem>>, vector<128x128xbf16>
    %cst = arith.constant dense<0.000000e+00> : vector<128x128xf32>
    %2 = tpu.matmul %0, %1, %cst {dimension_numbers = #tpu.dot_dimension_numbers<[1], [0], [0], [1], [0, 0, 1, 1], [], []>} : vector<128x128xbf16>, vector<128x128xbf16>, vector<128x128xf32> -> vector<128x128xf32>
    %c0_3 = arith.constant 0 : index
    %c0_4 = arith.constant 0 : index
    %3 = vector.load %arg4[%c0_3, %c0_4] : memref<128x128xf32, #tpu.memory_space<vmem>>, vector<128x128xf32>
    tpu.vector_store %arg4[%c0_3, %c0_4], %2 {strides = array<i32>} : memref<128x128xf32, #tpu.memory_space<vmem>>, vector<128x128xf32>,
    %c0_i32 = arith.constant 0 : i32
    %4 = arith.cmpi eq, %arg1, %c0_i32 : i32
    %5 = arith.extui %4 : i1 to i32
    %c0_i32_5 = arith.constant 0 : i32
    %6 = arith.cmpi ne, %5, %c0_i32_5 : i32
    scf.if %6 {
      %cst_20 = arith.constant 0.000000e+00 : f32
      %18 = vector.broadcast %cst_20 : f32 to vector<1x1x128xf32>
      %c0_21 = arith.constant 0 : index
      %c0_22 = arith.constant 0 : index
      %c0_23 = arith.constant 0 : index
      %19 = vector.load %arg5[%c0_21, %c0_22, %c0_23] : memref<1x1x128xf32, #tpu.memory_space<vmem>>, vector<1x1x128xf32>
      tpu.vector_store %arg5[%c0_21, %c0_22, %c0_23], %18 {strides = array<i32>} : memref<1x1x128xf32, #tpu.memory_space<vmem>>, vector<1x1x128xf32>,
      %cst_24 = arith.constant 0.000000e+00 : f32
      %20 = vector.broadcast %cst_24 : f32 to vector<1x1x128xf32>
      %c0_25 = arith.constant 0 : index
      %c0_26 = arith.constant 0 : index
      %c0_27 = arith.constant 0 : index
      %21 = vector.load %arg6[%c0_25, %c0_26, %c0_27] : memref<1x1x128xf32, #tpu.memory_space<vmem>>, vector<1x1x128xf32>
      tpu.vector_store %arg6[%c0_25, %c0_26, %c0_27], %20 {strides = array<i32>} : memref<1x1x128xf32, #tpu.memory_space<vmem>>, vector<1x1x128xf32>,
    } else {
    }
    %c0_6 = arith.constant 0 : index
    %c0_7 = arith.constant 0 : index
    %c0_8 = arith.constant 0 : index
    %7 = vector.load %arg5[%c0_6, %c0_7, %c0_8] : memref<1x1x128xf32, #tpu.memory_space<vmem>>, vector<1x1x128xf32>
    %cst_9 = arith.constant dense<0.000000e+00> : vector<128xf32>
    %8 = vector.multi_reduction <add>, %2, %cst_9 [0] : vector<128x128xf32> to vector<128xf32>
    %9 = vector.shape_cast %8 : vector<128xf32> to vector<1x1x128xf32>
    %10 = arith.addf %7, %9 : vector<1x1x128xf32>
    %c0_10 = arith.constant 0 : index
    %c0_11 = arith.constant 0 : index
    %c0_12 = arith.constant 0 : index
    %11 = vector.load %arg5[%c0_10, %c0_11, %c0_12] : memref<1x1x128xf32, #tpu.memory_space<vmem>>, vector<1x1x128xf32>
    tpu.vector_store %arg5[%c0_10, %c0_11, %c0_12], %10 {strides = array<i32>} : memref<1x1x128xf32, #tpu.memory_space<vmem>>, vector<1x1x128xf32>,
    %c0_13 = arith.constant 0 : index
    %c0_14 = arith.constant 0 : index
    %c0_15 = arith.constant 0 : index
    %12 = vector.load %arg6[%c0_13, %c0_14, %c0_15] : memref<1x1x128xf32, #tpu.memory_space<vmem>>, vector<1x1x128xf32>
    %13 = arith.mulf %2, %2 : vector<128x128xf32>
    %cst_16 = arith.constant dense<0.000000e+00> : vector<128xf32>
    %14 = vector.multi_reduction <add>, %13, %cst_16 [0] : vector<128x128xf32> to vector<128xf32>
    %15 = vector.shape_cast %14 : vector<128xf32> to vector<1x1x128xf32>
    %16 = arith.addf %12, %15 : vector<1x1x128xf32>
    %c0_17 = arith.constant 0 : index
    %c0_18 = arith.constant 0 : index
    %c0_19 = arith.constant 0 : index
    %17 = vector.load %arg6[%c0_17, %c0_18, %c0_19] : memref<1x1x128xf32, #tpu.memory_space<vmem>>, vector<1x1x128xf32>
    tpu.vector_store %arg6[%c0_17, %c0_18, %c0_19], %16 {strides = array<i32>} : memref<1x1x128xf32, #tpu.memory_space<vmem>>, vector<1x1x128xf32>,
    return
  }
  func.func @transform_0(%arg0: i32, %arg1: i32) -> (i32, i32) {
    %c2_i32 = arith.constant 2 : i32
    %0 = arith.muli %arg0, %c2_i32 : i32
    %1 = arith.addi %0, %arg1 : i32
    %c0_i32 = arith.constant 0 : i32
    %c0_i32_0 = arith.constant 0 : i32
    return %1, %c0_i32 : i32, i32
  }
  func.func @transform_1(%arg0: i32, %arg1: i32) -> (i32, i32) {
    %c0_i32 = arith.constant 0 : i32
    %c0_i32_0 = arith.constant 0 : i32
    %c0_i32_1 = arith.constant 0 : i32
    return %c0_i32, %c0_i32_0 : i32, i32
  }
  func.func @transform_2(%arg0: i32, %arg1: i32) -> (i32, i32) {
    %c2_i32 = arith.constant 2 : i32
    %0 = arith.muli %arg0, %c2_i32 : i32
    %1 = arith.addi %0, %arg1 : i32
    %c0_i32 = arith.constant 0 : i32
    %c0_i32_0 = arith.constant 0 : i32
    return %1, %c0_i32 : i32, i32
  }
  func.func @transform_3(%arg0: i32, %arg1: i32) -> (i32, i32, i32) {
    %c0_i32 = arith.constant 0 : i32
    %c0_i32_0 = arith.constant 0 : i32
    %c0_i32_1 = arith.constant 0 : i32
    return %arg0, %c0_i32, %c0_i32_0 : i32, i32, i32
  }
  func.func @transform_4(%arg0: i32, %arg1: i32) -> (i32, i32, i32) {
    %c0_i32 = arith.constant 0 : i32
    %c0_i32_0 = arith.constant 0 : i32
    %c0_i32_1 = arith.constant 0 : i32
    return %arg0, %c0_i32, %c0_i32_0 : i32, i32, i32
  }
}

module attributes {stable_mosaic.version = 11 : i64} {
  func.func @_scale_shift_lrelu_kernel(%arg0: i32, %arg1: memref<128x128xf32, #tpu.memory_space<vmem>>, %arg2: memref<1x128xf32, #tpu.memory_space<vmem>>, %arg3: memref<1x128xf32, #tpu.memory_space<vmem>>, %arg4: memref<128x128xf32, #tpu.memory_space<vmem>>) attributes {dimension_semantics = [#tpu.dimension_semantics<parallel>], iteration_bounds = array<i64: 4>, scalar_prefetch = 0 : i64, scratch_operands = 0 : i64, tpu.core_type = #tpu.core_type<tc>, window_params = [{transform_indices = @transform_0, window_bounds = array<i64: 128, 128>}, {pipeline_mode = #tpu.pipeline_mode<synchronous>, transform_indices = @transform_1, window_bounds = array<i64: 1, 128>}, {pipeline_mode = #tpu.pipeline_mode<synchronous>, transform_indices = @transform_2, window_bounds = array<i64: 1, 128>}, {transform_indices = @transform_3, window_bounds = array<i64: 128, 128>}]} {
    %c0 = arith.constant 0 : index
    %c0_0 = arith.constant 0 : index
    %0 = vector.load %arg1[%c0, %c0_0] : memref<128x128xf32, #tpu.memory_space<vmem>>, vector<128x128xf32>
    %c0_1 = arith.constant 0 : index
    %c0_2 = arith.constant 0 : index
    %1 = vector.load %arg2[%c0_1, %c0_2] : memref<1x128xf32, #tpu.memory_space<vmem>>, vector<1x128xf32>
    %2 = vector.broadcast %1 : vector<1x128xf32> to vector<128x128xf32>
    %3 = arith.mulf %0, %2 : vector<128x128xf32>
    %c0_3 = arith.constant 0 : index
    %c0_4 = arith.constant 0 : index
    %4 = vector.load %arg3[%c0_3, %c0_4] : memref<1x128xf32, #tpu.memory_space<vmem>>, vector<1x128xf32>
    %5 = vector.broadcast %4 : vector<1x128xf32> to vector<128x128xf32>
    %6 = arith.addf %3, %5 : vector<128x128xf32>
    %cst = arith.constant 0.000000e+00 : f32
    %7 = vector.broadcast %cst : f32 to vector<128x128xf32>
    %8 = arith.cmpf oge, %6, %7 : vector<128x128xf32>
    %cst_5 = arith.constant 2.000000e-01 : f32
    %9 = vector.broadcast %cst_5 : f32 to vector<128x128xf32>
    %10 = arith.mulf %9, %6 : vector<128x128xf32>
    %11 = arith.select %8, %6, %10 : vector<128x128xi1>, vector<128x128xf32>
    %c0_6 = arith.constant 0 : index
    %c0_7 = arith.constant 0 : index
    %12 = vector.load %arg4[%c0_6, %c0_7] : memref<128x128xf32, #tpu.memory_space<vmem>>, vector<128x128xf32>
    tpu.vector_store %arg4[%c0_6, %c0_7], %11 {strides = array<i32>} : memref<128x128xf32, #tpu.memory_space<vmem>>, vector<128x128xf32>,
    return
  }
  func.func @transform_0(%arg0: i32) -> (i32, i32) {
    %c0_i32 = arith.constant 0 : i32
    %c0_i32_0 = arith.constant 0 : i32
    return %arg0, %c0_i32 : i32, i32
  }
  func.func @transform_1(%arg0: i32) -> (i32, i32) {
    %c0_i32 = arith.constant 0 : i32
    %c0_i32_0 = arith.constant 0 : i32
    %c0_i32_1 = arith.constant 0 : i32
    return %c0_i32, %c0_i32_0 : i32, i32
  }
  func.func @transform_2(%arg0: i32) -> (i32, i32) {
    %c0_i32 = arith.constant 0 : i32
    %c0_i32_0 = arith.constant 0 : i32
    %c0_i32_1 = arith.constant 0 : i32
    return %c0_i32, %c0_i32_0 : i32, i32
  }
  func.func @transform_3(%arg0: i32) -> (i32, i32) {
    %c0_i32 = arith.constant 0 : i32
    %c0_i32_0 = arith.constant 0 : i32
    return %arg0, %c0_i32 : i32, i32
  }
}

</mosaic_0001>

<llo_original>
// kernel: conv_block_forward.3
$region0: #{conv_block_forward.3}
  #allocation0 [shape = 'u32[]', space=smem, size = 0x4, offset = 0x4, fixed_abs, tag = 'smem constant byte address 0x4 - core index']
  #allocation1 [shape = 'u32[144,128]{1,0:T(1,128)}', space=vmem, size = 0x12000, scoped, tag = 'internal scratch']
  %s0 = inlined_call_operand.vmem [shape: f32[512,128], index: 0, kind: input, shape index: {}]
  %s1 = inlined_call_operand.vmem [shape: f32[1,128], index: 1, kind: input, shape index: {}]
  %s2 = inlined_call_operand.vmem [shape: f32[1,128], index: 2, kind: input, shape index: {}]
  %s3 = inlined_call_operand.vmem [shape: f32[512,128], index: 3, kind: output, shape index: {}]
  %s4 = sld [smem:[#allocation0]]
  $region45: #{conv_block_forward.3} parent=0
    _
  %s6 = ssub.s32 1, %s4
  %s7 = scalar_select 0, %s6, %s4
  loop: start=0, step=1, limit=6
  $region2: #{conv_block_forward.3} parent=0 // loop_pre_header
    _
  $region3: #{conv_block_forward.3} parent=0 // loop_header
    %s9 = sphi 0, %s13
    %p10 = scmp.ge.s32.totalorder %s9, 6
    %s19 = sphi 0, %s21
    %s22 = sphi 0, %s19
    %s23 = sphi 0, %s22
    %s39 = sphi 0, %s23
    %s43 = sphi 0, %s43
    %s45 = sphi 0, %s43
    %s46 = sphi 0, %s45
    %s60 = sphi 0, %s46
    %s64 = sphi 0, %s64
    %s66 = sphi 0, %s64
    %s67 = sphi 0, %s66
    %s81 = sphi 0, %s67
    %s87 = sphi 0, %s89
    %s90 = sphi 0, %s87
    %s91 = sphi 0, %s90
    %s107 = sphi 0, %s91
  $region4: #{conv_block_forward.3} parent=0 // loop_header_branch
    %12 = sbr.rel (%p10) target = $region8
  $region5: #{conv_block_forward.3} parent=0 // loop_body
    %s14 = ssub.s32 %s9, 1
    %s15 = ssub.s32 %s9, 2
    %s16 = sadd.s32 %s9, 1
    %s17 = ssub.s32 %s9, %s16
    %p18 = scmp.eq.s32.totalorder %s17, 0
    %s20 = sadd.s32 %s19, 1
    %s21 = scalar_select %p18, %s19, %s20
    %p24 = pneg %p18
    %p25 = scmp.eq.s32.totalorder %s9, 3
    %p26 = por %p24, %p25
    %p27 = scmp.ne.s32.totalorder %s19, %s22
    %p28 = scmp.eq.s32.totalorder %s9, 0
    %p29 = por %p27, %p28
    %p30 = scmp.ne.s32.totalorder %s19, %s22
    %p31 = scmp.eq.s32.totalorder %s14, 3
    %p32 = por %p30, %p31
    %p33 = scmp.ne.s32.totalorder %s22, %s23
    %p34 = scmp.eq.s32.totalorder %s14, 0
    %p35 = por %p33, %p34
    %p36 = scmp.ne.s32.totalorder %s22, %s23
    %p37 = scmp.eq.s32.totalorder %s15, 3
    %p38 = por %p36, %p37
    %p40 = scmp.ne.s32.totalorder %s23, %s39
    %p41 = scmp.eq.s32.totalorder %s15, 0
    %p42 = por %p40, %p41
    %s44 = sadd.s32 %s43, 1
    %p47 = scmp.eq.s32.totalorder %s9, 3
    %p48 = scmp.ne.s32.totalorder %s43, %s45
    %p49 = scmp.eq.s32.totalorder %s9, 0
    %p50 = por %p48, %p49
    %p51 = scmp.ne.s32.totalorder %s43, %s45
    %p52 = scmp.eq.s32.totalorder %s14, 3
    %p53 = por %p51, %p52
    %p54 = scmp.ne.s32.totalorder %s45, %s46
    %p55 = scmp.eq.s32.totalorder %s14, 0
    %p56 = por %p54, %p55
    %p57 = scmp.ne.s32.totalorder %s45, %s46
    %p58 = scmp.eq.s32.totalorder %s15, 3
    %p59 = por %p57, %p58
    %p61 = scmp.ne.s32.totalorder %s46, %s60
    %p62 = scmp.eq.s32.totalorder %s15, 0
    %p63 = por %p61, %p62
    %s65 = sadd.s32 %s64, 1
    %p68 = scmp.eq.s32.totalorder %s9, 3
    %p69 = scmp.ne.s32.totalorder %s64, %s66
    %p70 = scmp.eq.s32.totalorder %s9, 0
    %p71 = por %p69, %p70
    %p72 = scmp.ne.s32.totalorder %s64, %s66
    %p73 = scmp.eq.s32.totalorder %s14, 3
    %p74 = por %p72, %p73
    %p75 = scmp.ne.s32.totalorder %s66, %s67
    %p76 = scmp.eq.s32.totalorder %s14, 0
    %p77 = por %p75, %p76
    %p78 = scmp.ne.s32.totalorder %s66, %s67
    %p79 = scmp.eq.s32.totalorder %s15, 3
    %p80 = por %p78, %p79
    %p82 = scmp.ne.s32.totalorder %s67, %s81
    %p83 = scmp.eq.s32.totalorder %s15, 0
    %p84 = por %p82, %p83
    %s85 = ssub.s32 %s9, %s16
    %p86 = scmp.eq.s32.totalorder %s85, 0
    %s88 = sadd.s32 %s87, 1
    %s89 = scalar_select %p86, %s87, %s88
    %p92 = pneg %p86
    %p93 = scmp.eq.s32.totalorder %s9, 3
    %p94 = por %p92, %p93
    %p95 = scmp.ne.s32.totalorder %s87, %s90
    %p96 = scmp.eq.s32.totalorder %s9, 0
    %p97 = por %p95, %p96
    %p98 = scmp.ne.s32.totalorder %s87, %s90
    %p99 = scmp.eq.s32.totalorder %s14, 3
    %p100 = por %p98, %p99
    %p101 = scmp.ne.s32.totalorder %s90, %s91
    %p102 = scmp.eq.s32.totalorder %s14, 0
    %p103 = por %p101, %p102
    %p104 = scmp.ne.s32.totalorder %s90, %s91
    %p105 = scmp.eq.s32.totalorder %s15, 3
    %p106 = por %p104, %p105
    %p108 = scmp.ne.s32.totalorder %s91, %s107
    %p109 = scmp.eq.s32.totalorder %s15, 0
    %p110 = por %p108, %p109
    %p111 = scmp.le.s32.totalorder 1, %s9
    %p112 = scmp.lt.s32.totalorder %s9, 5
    %p113 = pnand %p111, %p112
    %p114 = pneg %p113
    // Predicated region
    $region9: #{conv_block_forward.3} parent=5 // pred_check
      _
    $region10: #{conv_block_forward.3} parent=5 // pred_check_branch
      %116 = sbr.rel (%p113) target = $region12
    $region11: #{conv_block_forward.3} parent=5 // pred_region
      %s117 = ssub.s32 %s9, 1
      // Predicated region
      $region13: #{conv_block_forward.3} parent=11 // pred_check
        %p118 = pneg %p56
      $region14: #{conv_block_forward.3} parent=11 // pred_check_branch
        %120 = sbr.rel (%p118) target = $region16
      $region15: #{conv_block_forward.3} parent=11 // pred_region
        _
      $region16: #{conv_block_forward.3} parent=11 // pred_fallthru
        _
      // Predicated region
      $region17: #{conv_block_forward.3} parent=11 // pred_check
        %p121 = pneg %p77
      $region18: #{conv_block_forward.3} parent=11 // pred_check_branch
        %123 = sbr.rel (%p121) target = $region20
      $region19: #{conv_block_forward.3} parent=11 // pred_region
        _
      $region20: #{conv_block_forward.3} parent=11 // pred_fallthru
        _
    $region12: #{conv_block_forward.3} parent=5 // pred_fallthru
      _
    %p124 = scmp.lt.s32.totalorder %s9, 4
    // Predicated region
    $region21: #{conv_block_forward.3} parent=5 // pred_check
      %p125 = pneg %p124
    $region22: #{conv_block_forward.3} parent=5 // pred_check_branch
      %127 = sbr.rel (%p125) target = $region24
    $region23: #{conv_block_forward.3} parent=5 // pred_region
      // Predicated region
      $region25: #{conv_block_forward.3} parent=23 // pred_check
        %p128 = pneg %p29
      $region26: #{conv_block_forward.3} parent=23 // pred_check_branch
        %130 = sbr.rel (%p128) target = $region28
      $region27: #{conv_block_forward.3} parent=23 // pred_region
        %s131 = smul.u32 16, %s9
        %p132 = scmp.lt.s32.totalorder %s131, 63
        %s133 = scalar_select %p132, %s131, 63
        %s134 = smul.addr %s133, 8
        %s135 = scalar_lea.vmem %s0, %s134
        %s136 = smul.u32 16, %s9
      $region28: #{conv_block_forward.3} parent=23 // pred_fallthru
        _
    $region24: #{conv_block_forward.3} parent=5 // pred_fallthru
      _
    %p137 = scmp.le.s32.totalorder 1, %s9
    %p138 = scmp.lt.s32.totalorder %s9, 5
    %p139 = pnand %p137, %p138
    %p140 = pneg %p139
    // Predicated region
    $region29: #{conv_block_forward.3} parent=5 // pred_check
      _
    $region30: #{conv_block_forward.3} parent=5 // pred_check_branch
      %142 = sbr.rel (%p139) target = $region32
    $region31: #{conv_block_forward.3} parent=5 // pred_region
      %s143 = ssub.s32 %s9, 1
      %s144 = smul.u32 16, %s14
      %p145 = scmp.lt.s32.totalorder %s144, 63
      %s146 = scalar_select %p145, %s144, 63
      %s147 = smul.addr %s146, 8
      %s148 = scalar_lea.vmem %s0, %s147
      %p149 = pneg %p35
      %p150 = pneg %p32
      %p151 = pneg %p56
      %p152 = pneg %p53
      %p153 = pneg %p77
      %p154 = pneg %p74
      %p155 = pneg %p103
      %p156 = pneg %p100
      %s157 = smul.u32 16, %s14
      %p158 = scmp.lt.s32.totalorder %s157, 63
      %s159 = scalar_select %p158, %s157, 63
      %s160 = smul.addr %s159, 8
      %s161 = scalar_lea.vmem %s3, %s160
      %s162 = smul.u32 16, %s14
      %p163 = scmp.lt.s32.totalorder %s162, 63
      %s164 = scalar_select %p163, %s162, 63
      %s165 = smul.addr %s164, 8
      %s166 = scalar_lea.vmem %s0, %s165
      %s167 = smul.u32 16, %s14
      %s168 = smul.u32 16, %s14
      %p169 = scmp.lt.s32.totalorder %s168, 63
      %s170 = scalar_select %p169, %s168, 63
      %s171 = smul.addr %s170, 8
      %s172 = scalar_lea.vmem %s3, %s171
      %s173 = smul.u32 16, %s14
      %v174 = vld [vmem:[%s166] sm:$0xff]
      %v175 = vld [vmem:[%s166 + $0x8] sm:$0xff]
      %v176 = vld [vmem:[%s166 + $0x10] sm:$0xff]
      %v177 = vld [vmem:[%s166 + $0x18] sm:$0xff]
      %v178 = vld [vmem:[%s166 + $0x20] sm:$0xff]
      %v179 = vld [vmem:[%s166 + $0x28] sm:$0xff]
      %v180 = vld [vmem:[%s166 + $0x30] sm:$0xff]
      %v181 = vld [vmem:[%s166 + $0x38] sm:$0xff]
      %v182 = vld [vmem:[%s166 + $0x40] sm:$0xff]
      %v183 = vld [vmem:[%s166 + $0x48] sm:$0xff]
      %v184 = vld [vmem:[%s166 + $0x50] sm:$0xff]
      %v185 = vld [vmem:[%s166 + $0x58] sm:$0xff]
      %v186 = vld [vmem:[%s166 + $0x60] sm:$0xff]
      %v187 = vld [vmem:[%s166 + $0x68] sm:$0xff]
      %v188 = vld [vmem:[%s166 + $0x70] sm:$0xff]
      %v189 = vld [vmem:[%s166 + $0x78] sm:$0xff]
      %v190 = vld [vmem:[%s1] sm:$0x1]
      %v192 = vlaneseq
      %v193 = vshrl.u32 %v192, 7
      %v194 = vsub.s32 0, %v193
      %v195 = vrot.slane %v190, %v194
      %v197 = vmul.f32 %v174, %v195
      %v198 = vmul.f32 %v175, %v195
      %v199 = vmul.f32 %v176, %v195
      %v200 = vmul.f32 %v177, %v195
      %v201 = vmul.f32 %v178, %v195
      %v202 = vmul.f32 %v179, %v195
      %v203 = vmul.f32 %v180, %v195
      %v204 = vmul.f32 %v181, %v195
      %v205 = vmul.f32 %v182, %v195
      %v206 = vmul.f32 %v183, %v195
      %v207 = vmul.f32 %v184, %v195
      %v208 = vmul.f32 %v185, %v195
      %v209 = vmul.f32 %v186, %v195
      %v210 = vmul.f32 %v187, %v195
      %v211 = vmul.f32 %v188, %v195
      %v212 = vmul.f32 %v189, %v195
      %v213 = vld [vmem:[%s2] sm:$0x1]
      %v215 = vlaneseq
      %v216 = vshrl.u32 %v215, 7
      %v217 = vsub.s32 0, %v216
      %v218 = vrot.slane %v213, %v217
      %v220 = vadd.f32 %v197, %v218
      %v221 = vadd.f32 %v198, %v218
      %v222 = vadd.f32 %v199, %v218
      %v223 = vadd.f32 %v200, %v218
      %v224 = vadd.f32 %v201, %v218
      %v225 = vadd.f32 %v202, %v218
      %v226 = vadd.f32 %v203, %v218
      %v227 = vadd.f32 %v204, %v218
      %v228 = vadd.f32 %v205, %v218
      %v229 = vadd.f32 %v206, %v218
      %v230 = vadd.f32 %v207, %v218
      %v231 = vadd.f32 %v208, %v218
      %v232 = vadd.f32 %v209, %v218
      %v233 = vadd.f32 %v210, %v218
      %v234 = vadd.f32 %v211, %v218
      %v235 = vadd.f32 %v212, %v218
      %vm236 = vcmp.ge.f32.partialorder %v220, 0.0
      %vm237 = vcmp.ge.f32.partialorder %v221, 0.0
      %vm238 = vcmp.ge.f32.partialorder %v222, 0.0
      %vm239 = vcmp.ge.f32.partialorder %v223, 0.0
      %vm240 = vcmp.ge.f32.partialorder %v224, 0.0
      %vm241 = vcmp.ge.f32.partialorder %v225, 0.0
      %vm242 = vcmp.ge.f32.partialorder %v226, 0.0
      %vm243 = vcmp.ge.f32.partialorder %v227, 0.0
      %vm244 = vcmp.ge.f32.partialorder %v228, 0.0
      %vm245 = vcmp.ge.f32.partialorder %v229, 0.0
      %vm246 = vcmp.ge.f32.partialorder %v230, 0.0
      %vm247 = vcmp.ge.f32.partialorder %v231, 0.0
      %vm248 = vcmp.ge.f32.partialorder %v232, 0.0
      %vm249 = vcmp.ge.f32.partialorder %v233, 0.0
      %vm250 = vcmp.ge.f32.partialorder %v234, 0.0
      %vm251 = vcmp.ge.f32.partialorder %v235, 0.0
      %v252 = vmul.f32 %v220, 0.2
      %v253 = vmul.f32 %v221, 0.2
      %v254 = vmul.f32 %v222, 0.2
      %v255 = vmul.f32 %v223, 0.2
      %v256 = vmul.f32 %v224, 0.2
      %v257 = vmul.f32 %v225, 0.2
      %v258 = vmul.f32 %v226, 0.2
      %v259 = vmul.f32 %v227, 0.2
      %v260 = vmul.f32 %v228, 0.2
      %v261 = vmul.f32 %v229, 0.2
      %v262 = vmul.f32 %v230, 0.2
      %v263 = vmul.f32 %v231, 0.2
      %v264 = vmul.f32 %v232, 0.2
      %v265 = vmul.f32 %v233, 0.2
      %v266 = vmul.f32 %v234, 0.2
      %v267 = vmul.f32 %v235, 0.2
      %v268 = vsel %vm236, %v220, %v252
      %v269 = vsel %vm237, %v221, %v253
      %v270 = vsel %vm238, %v222, %v254
      %v271 = vsel %vm239, %v223, %v255
      %v272 = vsel %vm240, %v224, %v256
      %v273 = vsel %vm241, %v225, %v257
      %v274 = vsel %vm242, %v226, %v258
      %v275 = vsel %vm243, %v227, %v259
      %v276 = vsel %vm244, %v228, %v260
      %v277 = vsel %vm245, %v229, %v261
      %v278 = vsel %vm246, %v230, %v262
      %v279 = vsel %vm247, %v231, %v263
      %v280 = vsel %vm248, %v232, %v264
      %v281 = vsel %vm249, %v233, %v265
      %v282 = vsel %vm250, %v234, %v266
      %v283 = vsel %vm251, %v235, %v267
      %284 = vst [vmem:[%s172] sm:$0xff] %v268
      %285 = vst [vmem:[%s172 + $0x8] sm:$0xff] %v269
      %286 = vst [vmem:[%s172 + $0x10] sm:$0xff] %v270
      %287 = vst [vmem:[%s172 + $0x18] sm:$0xff] %v271
      %288 = vst [vmem:[%s172 + $0x20] sm:$0xff] %v272
      %289 = vst [vmem:[%s172 + $0x28] sm:$0xff] %v273
      %290 = vst [vmem:[%s172 + $0x30] sm:$0xff] %v274
      %291 = vst [vmem:[%s172 + $0x38] sm:$0xff] %v275
      %292 = vst [vmem:[%s172 + $0x40] sm:$0xff] %v276
      %293 = vst [vmem:[%s172 + $0x48] sm:$0xff] %v277
      %294 = vst [vmem:[%s172 + $0x50] sm:$0xff] %v278
      %295 = vst [vmem:[%s172 + $0x58] sm:$0xff] %v279
      %296 = vst [vmem:[%s172 + $0x60] sm:$0xff] %v280
      %297 = vst [vmem:[%s172 + $0x68] sm:$0xff] %v281
      %298 = vst [vmem:[%s172 + $0x70] sm:$0xff] %v282
      %299 = vst [vmem:[%s172 + $0x78] sm:$0xff] %v283
      %s300 = smul.u32 16, %s14
      %p301 = scmp.lt.s32.totalorder %s300, 63
      %s302 = scalar_select %p301, %s300, 63
      %s303 = smul.addr %s302, 8
      %s304 = scalar_lea.vmem %s3, %s303
      // Predicated region
      $region33: #{conv_block_forward.3} parent=31 // pred_check
        %p305 = pneg %p100
      $region34: #{conv_block_forward.3} parent=31 // pred_check_branch
        %307 = sbr.rel (%p305) target = $region36
      $region35: #{conv_block_forward.3} parent=31 // pred_region
        %s308 = smul.u32 16, %s14
      $region36: #{conv_block_forward.3} parent=31 // pred_fallthru
        _
    $region32: #{conv_block_forward.3} parent=5 // pred_fallthru
      _
    %p309 = scmp.le.s32.totalorder 2, %s9
    // Predicated region
    $region37: #{conv_block_forward.3} parent=5 // pred_check
      %p310 = pneg %p309
    $region38: #{conv_block_forward.3} parent=5 // pred_check_branch
      %312 = sbr.rel (%p310) target = $region40
    $region39: #{conv_block_forward.3} parent=5 // pred_region
      %s313 = ssub.s32 %s9, 2
      // Predicated region
      $region41: #{conv_block_forward.3} parent=39 // pred_check
        %p314 = pneg %p106
      $region42: #{conv_block_forward.3} parent=39 // pred_check_branch
        %316 = sbr.rel (%p314) target = $region44
      $region43: #{conv_block_forward.3} parent=39 // pred_region
        %s317 = smul.u32 16, %s15
        %p318 = scmp.lt.s32.totalorder %s317, 63
        %s319 = scalar_select %p318, %s317, 63
        %s320 = smul.addr %s319, 8
        %s321 = scalar_lea.vmem %s3, %s320
      $region44: #{conv_block_forward.3} parent=39 // pred_fallthru
        _
    $region40: #{conv_block_forward.3} parent=5 // pred_fallthru
      _
  $region6: #{conv_block_forward.3} parent=0 // loop_footer
    %s13 = sadd.s32 1, %s9
  $region7: #{conv_block_forward.3} parent=0 // loop_footer_branch
    %8 = sbr.rel target = $region3
  $region8: #{conv_block_forward.3} parent=0 // loop_exit
    _

// kernel: conv_block_forward.2
$region0: #{conv_block_forward.2}
  #allocation0 [shape = 'u32[]', space=smem, size = 0x4, offset = 0x4, fixed_abs, tag = 'smem constant byte address 0x4 - core index']
  #allocation1 [shape = 'u32[144,128]{1,0:T(1,128)}', space=vmem, size = 0x12000, scoped, tag = 'internal scratch']
  %s0 = inlined_call_operand.vmem [shape: bf16[512,128], index: 0, kind: input, shape index: {}]
  %s1 = inlined_call_operand.vmem [shape: bf16[128,128], index: 1, kind: input, shape index: {}]
  %s2 = inlined_call_operand.vmem [shape: f32[512,128], index: 2, kind: output, shape index: {0}]
  %s3 = inlined_call_operand.vmem [shape: f32[2,1,128], index: 3, kind: output, shape index: {1}]
  %s4 = inlined_call_operand.vmem [shape: f32[2,1,128], index: 4, kind: output, shape index: {2}]
  %5 = xla_tuple %s2, %s3, %s4
  %s6 = sld [smem:[#allocation0]]
  $region61: #{conv_block_forward.2} parent=0
    _
  %s8 = ssub.s32 1, %s6
  %s9 = scalar_select 0, %s8, %s6
  loop: start=0, step=1, limit=6
  $region2: #{conv_block_forward.2} parent=0 // loop_pre_header
    _
  $region3: #{conv_block_forward.2} parent=0 // loop_header
    %s11 = sphi 0, %s15
    %p12 = scmp.ge.s32.totalorder %s11, 6
    %s18 = sphi 0, %s30
    %s19 = sphi 0, %s26
    %s20 = sphi 0, %s18
    %s21 = sphi 0, %s19
    %s22 = sphi 0, %s20
    %s23 = sphi 0, %s21
    %s37 = sphi 0, %s39
    %s40 = sphi 0, %s37
    %s41 = sphi 0, %s40
    %s57 = sphi 0, %s41
    %s61 = sphi 0, %s61
    %s63 = sphi 0, %s61
    %s64 = sphi 0, %s63
    %s78 = sphi 0, %s64
    %s88 = sphi 0, %s90
    %s91 = sphi 0, %s88
    %s92 = sphi 0, %s91
    %s108 = sphi 0, %s92
    %s114 = sphi 0, %s116
    %s117 = sphi 0, %s114
    %s118 = sphi 0, %s117
    %s134 = sphi 0, %s118
    %s140 = sphi 0, %s142
    %s143 = sphi 0, %s140
    %s144 = sphi 0, %s143
    %s160 = sphi 0, %s144
  $region4: #{conv_block_forward.2} parent=0 // loop_header_branch
    %14 = sbr.rel (%p12) target = $region8
  $region5: #{conv_block_forward.2} parent=0 // loop_body
    %s16 = ssub.s32 %s11, 1
    %s17 = ssub.s32 %s11, 2
    %s24 = sadd.s32 1, %s19
    %p25 = scmp.ge.s32.totalorder %s24, 2
    %s26 = scalar_select %p25, 0, %s24
    %s27 = sadd.s32 1, %s18
    %s28 = scalar_select %p25, %s27, %s18
    %p29 = scmp.ge.s32.totalorder %s28, 2
    %s30 = scalar_select %p29, 0, %s28
    %s31 = smul.u32 %s18, 2
    %s32 = sadd.s32 %s31, %s19
    %s33 = smul.u32 %s30, 2
    %s34 = sadd.s32 %s33, %s26
    %s35 = ssub.s32 %s32, %s34
    %p36 = scmp.eq.s32.totalorder %s35, 0
    %s38 = sadd.s32 %s37, 1
    %s39 = scalar_select %p36, %s37, %s38
    %p42 = pneg %p36
    %p43 = scmp.eq.s32.totalorder %s11, 3
    %p44 = por %p42, %p43
    %p45 = scmp.ne.s32.totalorder %s37, %s40
    %p46 = scmp.eq.s32.totalorder %s11, 0
    %p47 = por %p45, %p46
    %p48 = scmp.ne.s32.totalorder %s37, %s40
    %p49 = scmp.eq.s32.totalorder %s16, 3
    %p50 = por %p48, %p49
    %p51 = scmp.ne.s32.totalorder %s40, %s41
    %p52 = scmp.eq.s32.totalorder %s16, 0
    %p53 = por %p51, %p52
    %p54 = scmp.ne.s32.totalorder %s40, %s41
    %p55 = scmp.eq.s32.totalorder %s17, 3
    %p56 = por %p54, %p55
    %p58 = scmp.ne.s32.totalorder %s41, %s57
    %p59 = scmp.eq.s32.totalorder %s17, 0
    %p60 = por %p58, %p59
    %s62 = sadd.s32 %s61, 1
    %p65 = scmp.eq.s32.totalorder %s11, 3
    %p66 = scmp.ne.s32.totalorder %s61, %s63
    %p67 = scmp.eq.s32.totalorder %s11, 0
    %p68 = por %p66, %p67
    %p69 = scmp.ne.s32.totalorder %s61, %s63
    %p70 = scmp.eq.s32.totalorder %s16, 3
    %p71 = por %p69, %p70
    %p72 = scmp.ne.s32.totalorder %s63, %s64
    %p73 = scmp.eq.s32.totalorder %s16, 0
    %p74 = por %p72, %p73
    %p75 = scmp.ne.s32.totalorder %s63, %s64
    %p76 = scmp.eq.s32.totalorder %s17, 3
    %p77 = por %p75, %p76
    %p79 = scmp.ne.s32.totalorder %s64, %s78
    %p80 = scmp.eq.s32.totalorder %s17, 0
    %p81 = por %p79, %p80
    %s82 = smul.u32 %s18, 2
    %s83 = sadd.s32 %s82, %s19
    %s84 = smul.u32 %s30, 2
    %s85 = sadd.s32 %s84, %s26
    %s86 = ssub.s32 %s83, %s85
    %p87 = scmp.eq.s32.totalorder %s86, 0
    %s89 = sadd.s32 %s88, 1
    %s90 = scalar_select %p87, %s88, %s89
    %p93 = pneg %p87
    %p94 = scmp.eq.s32.totalorder %s11, 3
    %p95 = por %p93, %p94
    %p96 = scmp.ne.s32.totalorder %s88, %s91
    %p97 = scmp.eq.s32.totalorder %s11, 0
    %p98 = por %p96, %p97
    %p99 = scmp.ne.s32.totalorder %s88, %s91
    %p100 = scmp.eq.s32.totalorder %s16, 3
    %p101 = por %p99, %p100
    %p102 = scmp.ne.s32.totalorder %s91, %s92
    %p103 = scmp.eq.s32.totalorder %s16, 0
    %p104 = por %p102, %p103
    %p105 = scmp.ne.s32.totalorder %s91, %s92
    %p106 = scmp.eq.s32.totalorder %s17, 3
    %p107 = por %p105, %p106
    %p109 = scmp.ne.s32.totalorder %s92, %s108
    %p110 = scmp.eq.s32.totalorder %s17, 0
    %p111 = por %p109, %p110
    %s112 = ssub.s32 %s18, %s30
    %p113 = scmp.eq.s32.totalorder %s112, 0
    %s115 = sadd.s32 %s114, 1
    %s116 = scalar_select %p113, %s114, %s115
    %p119 = pneg %p113
    %p120 = scmp.eq.s32.totalorder %s11, 3
    %p121 = por %p119, %p120
    %p122 = scmp.ne.s32.totalorder %s114, %s117
    %p123 = scmp.eq.s32.totalorder %s11, 0
    %p124 = por %p122, %p123
    %p125 = scmp.ne.s32.totalorder %s114, %s117
    %p126 = scmp.eq.s32.totalorder %s16, 3
    %p127 = por %p125, %p126
    %p128 = scmp.ne.s32.totalorder %s117, %s118
    %p129 = scmp.eq.s32.totalorder %s16, 0
    %p130 = por %p128, %p129
    %p131 = scmp.ne.s32.totalorder %s117, %s118
    %p132 = scmp.eq.s32.totalorder %s17, 3
    %p133 = por %p131, %p132
    %p135 = scmp.ne.s32.totalorder %s118, %s134
    %p136 = scmp.eq.s32.totalorder %s17, 0
    %p137 = por %p135, %p136
    %s138 = ssub.s32 %s18, %s30
    %p139 = scmp.eq.s32.totalorder %s138, 0
    %s141 = sadd.s32 %s140, 1
    %s142 = scalar_select %p139, %s140, %s141
    %p145 = pneg %p139
    %p146 = scmp.eq.s32.totalorder %s11, 3
    %p147 = por %p145, %p146
    %p148 = scmp.ne.s32.totalorder %s140, %s143
    %p149 = scmp.eq.s32.totalorder %s11, 0
    %p150 = por %p148, %p149
    %p151 = scmp.ne.s32.totalorder %s140, %s143
    %p152 = scmp.eq.s32.totalorder %s16, 3
    %p153 = por %p151, %p152
    %p154 = scmp.ne.s32.totalorder %s143, %s144
    %p155 = scmp.eq.s32.totalorder %s16, 0
    %p156 = por %p154, %p155
    %p157 = scmp.ne.s32.totalorder %s143, %s144
    %p158 = scmp.eq.s32.totalorder %s17, 3
    %p159 = por %p157, %p158
    %p161 = scmp.ne.s32.totalorder %s144, %s160
    %p162 = scmp.eq.s32.totalorder %s17, 0
    %p163 = por %p161, %p162
    %p164 = scmp.le.s32.totalorder 1, %s11
    %p165 = scmp.lt.s32.totalorder %s11, 5
    %p166 = pnand %p164, %p165
    %p167 = pneg %p166
    // Predicated region
    $region9: #{conv_block_forward.2} parent=5 // pred_check
      _
    $region10: #{conv_block_forward.2} parent=5 // pred_check_branch
      %169 = sbr.rel (%p166) target = $region12
    $region11: #{conv_block_forward.2} parent=5 // pred_region
      %s170 = ssub.s32 %s11, 1
      // Predicated region
      $region13: #{conv_block_forward.2} parent=11 // pred_check
        %p171 = pneg %p74
      $region14: #{conv_block_forward.2} parent=11 // pred_check_branch
        %173 = sbr.rel (%p171) target = $region16
      $region15: #{conv_block_forward.2} parent=11 // pred_region
        _
      $region16: #{conv_block_forward.2} parent=11 // pred_fallthru
        _
    $region12: #{conv_block_forward.2} parent=5 // pred_fallthru
      _
    %p174 = scmp.lt.s32.totalorder %s11, 4
    // Predicated region
    $region17: #{conv_block_forward.2} parent=5 // pred_check
      %p175 = pneg %p174
    $region18: #{conv_block_forward.2} parent=5 // pred_check_branch
      %177 = sbr.rel (%p175) target = $region20
    $region19: #{conv_block_forward.2} parent=5 // pred_region
      // Predicated region
      $region21: #{conv_block_forward.2} parent=19 // pred_check
        %p178 = pneg %p47
      $region22: #{conv_block_forward.2} parent=19 // pred_check_branch
        %180 = sbr.rel (%p178) target = $region24
      $region23: #{conv_block_forward.2} parent=19 // pred_region
        %s181 = smul.u32 %s18, 2
        %s182 = sadd.s32 %s181, %s19
        %s183 = smul.u32 16, %s182
        %p184 = scmp.lt.s32.totalorder %s183, 63
        %s185 = scalar_select %p184, %s183, 63
        %s186 = smul.addr %s185, 4
        %s187 = scalar_lea.vmem %s0, %s186
        %s188 = smul.u32 %s18, 2
        %s189 = sadd.s32 %s188, %s19
        %s190 = smul.u32 16, %s189
      $region24: #{conv_block_forward.2} parent=19 // pred_fallthru
        _
    $region20: #{conv_block_forward.2} parent=5 // pred_fallthru
      _
    %p191 = scmp.le.s32.totalorder 1, %s11
    %p192 = scmp.lt.s32.totalorder %s11, 5
    %p193 = pnand %p191, %p192
    %p194 = pneg %p193
    // Predicated region
    $region25: #{conv_block_forward.2} parent=5 // pred_check
      _
    $region26: #{conv_block_forward.2} parent=5 // pred_check_branch
      %196 = sbr.rel (%p193) target = $region28
    $region27: #{conv_block_forward.2} parent=5 // pred_region
      %s197 = ssub.s32 %s11, 1
      %s198 = smul.u32 %s20, 2
      %s199 = sadd.s32 %s198, %s21
      %s200 = smul.u32 16, %s199
      %p201 = scmp.lt.s32.totalorder %s200, 63
      %s202 = scalar_select %p201, %s200, 63
      %s203 = smul.addr %s202, 4
      %s204 = scalar_lea.vmem %s0, %s203
      %p205 = pneg %p53
      %p206 = pneg %p50
      %p207 = pneg %p74
      %p208 = pneg %p71
      %p209 = pneg %p104
      %p210 = pneg %p101
      %s211 = smul.u32 %s20, 2
      %s212 = sadd.s32 %s211, %s21
      %s213 = smul.u32 16, %s212
      %p214 = scmp.lt.s32.totalorder %s213, 63
      %s215 = scalar_select %p214, %s213, 63
      %s216 = smul.addr %s215, 8
      %s217 = scalar_lea.vmem %s2, %s216
      %p218 = pneg %p130
      %p219 = pneg %p127
      %p220 = scmp.lt.s32.totalorder %s20, 1
      %s221 = scalar_select %p220, %s20, 1
      %s222 = scalar_lea.vmem %s3, %s221
      %p223 = pneg %p156
      %p224 = pneg %p153
      %p225 = scmp.lt.s32.totalorder %s20, 1
      %s226 = scalar_select %p225, %s20, 1
      %s227 = scalar_lea.vmem %s4, %s226
      %s228 = smul.u32 %s20, 2
      %s229 = sadd.s32 %s228, %s21
      %s230 = smul.u32 16, %s229
      %p231 = scmp.lt.s32.totalorder %s230, 63
      %s232 = scalar_select %p231, %s230, 63
      %s233 = smul.addr %s232, 4
      %s234 = scalar_lea.vmem %s0, %s233
      %s235 = smul.u32 %s20, 2
      %s236 = sadd.s32 %s235, %s21
      %s237 = smul.u32 16, %s236
      %s238 = smul.u32 %s20, 2
      %s239 = sadd.s32 %s238, %s21
      %s240 = smul.u32 16, %s239
      %p241 = scmp.lt.s32.totalorder %s240, 63
      %s242 = scalar_select %p241, %s240, 63
      %s243 = smul.addr %s242, 8
      %s244 = scalar_lea.vmem %s2, %s243
      %s245 = smul.u32 %s20, 2
      %s246 = sadd.s32 %s245, %s21
      %s247 = smul.u32 16, %s246
      %p248 = scmp.lt.s32.totalorder %s20, 1
      %s249 = scalar_select %p248, %s20, 1
      %s250 = scalar_lea.vmem %s3, %s249
      %p251 = scmp.lt.s32.totalorder %s20, 1
      %s252 = scalar_select %p251, %s20, 1
      %s253 = scalar_lea.vmem %s4, %s252
      %v255 = vld [vmem:[%s234] sm:$0xf]
      %v256 = vld [vmem:[%s234 + $0x4] sm:$0xf]
      %v257 = vld [vmem:[%s234 + $0x8] sm:$0xf]
      %v258 = vld [vmem:[%s234 + $0xc] sm:$0xf]
      %v259 = vld [vmem:[%s234 + $0x10] sm:$0xf]
      %v260 = vld [vmem:[%s234 + $0x14] sm:$0xf]
      %v261 = vld [vmem:[%s234 + $0x18] sm:$0xf]
      %v262 = vld [vmem:[%s234 + $0x1c] sm:$0xf]
      %v263 = vld [vmem:[%s234 + $0x20] sm:$0xf]
      %v264 = vld [vmem:[%s234 + $0x24] sm:$0xf]
      %v265 = vld [vmem:[%s234 + $0x28] sm:$0xf]
      %v266 = vld [vmem:[%s234 + $0x2c] sm:$0xf]
      %v267 = vld [vmem:[%s234 + $0x30] sm:$0xf]
      %v268 = vld [vmem:[%s234 + $0x34] sm:$0xf]
      %v269 = vld [vmem:[%s234 + $0x38] sm:$0xf]
      %v270 = vld [vmem:[%s234 + $0x3c] sm:$0xf]
      %v271 = vld [vmem:[%s1] sm:$0xf]
      %v272 = vld [vmem:[%s1 + $0x4] sm:$0xf]
      %v273 = vld [vmem:[%s1 + $0x8] sm:$0xf]
      %v274 = vld [vmem:[%s1 + $0xc] sm:$0xf]
      %v275 = vld [vmem:[%s1 + $0x10] sm:$0xf]
      %v276 = vld [vmem:[%s1 + $0x14] sm:$0xf]
      %v277 = vld [vmem:[%s1 + $0x18] sm:$0xf]
      %v278 = vld [vmem:[%s1 + $0x1c] sm:$0xf]
      %v279 = vld [vmem:[%s1 + $0x20] sm:$0xf]
      %v280 = vld [vmem:[%s1 + $0x24] sm:$0xf]
      %v281 = vld [vmem:[%s1 + $0x28] sm:$0xf]
      %v282 = vld [vmem:[%s1 + $0x2c] sm:$0xf]
      %v283 = vld [vmem:[%s1 + $0x30] sm:$0xf]
      %v284 = vld [vmem:[%s1 + $0x34] sm:$0xf]
      %v285 = vld [vmem:[%s1 + $0x38] sm:$0xf]
      %v286 = vld [vmem:[%s1 + $0x3c] sm:$0xf]
      %v303 = vunpack.c.l.b16 %v255
      %v304 = vunpack.c.l.b16 %v256
      %v305 = vunpack.c.l.b16 %v257
      %v306 = vunpack.c.l.b16 %v258
      %v307 = vunpack.c.l.b16 %v259
      %v308 = vunpack.c.l.b16 %v260
      %v309 = vunpack.c.l.b16 %v261
      %v310 = vunpack.c.l.b16 %v262
      %v311 = vunpack.c.l.b16 %v263
      %v312 = vunpack.c.l.b16 %v264
      %v313 = vunpack.c.l.b16 %v265
      %v314 = vunpack.c.l.b16 %v266
      %v315 = vunpack.c.l.b16 %v267
      %v316 = vunpack.c.l.b16 %v268
      %v317 = vunpack.c.l.b16 %v269
      %v318 = vunpack.c.l.b16 %v270
      %v319 = vpack.c.b16 %v304, %v303
      %v320 = vpack.c.b16 %v306, %v305
      %v321 = vpack.c.b16 %v308, %v307
      %v322 = vpack.c.b16 %v310, %v309
      %v323 = vpack.c.b16 %v312, %v311
      %v324 = vpack.c.b16 %v314, %v313
      %v325 = vpack.c.b16 %v316, %v315
      %v326 = vpack.c.b16 %v318, %v317
      %v351 = vunpack.c.l.b16 %v271
      %v352 = vunpack.c.l.b16 %v272
      %v353 = vunpack.c.l.b16 %v273
      %v354 = vunpack.c.l.b16 %v274
      %v355 = vunpack.c.l.b16 %v275
      %v356 = vunpack.c.l.b16 %v276
      %v357 = vunpack.c.l.b16 %v277
      %v358 = vunpack.c.l.b16 %v278
      %v359 = vunpack.c.l.b16 %v279
      %v360 = vunpack.c.l.b16 %v280
      %v361 = vunpack.c.l.b16 %v281
      %v362 = vunpack.c.l.b16 %v282
      %v363 = vunpack.c.l.b16 %v283
      %v364 = vunpack.c.l.b16 %v284
      %v365 = vunpack.c.l.b16 %v285
      %v366 = vunpack.c.l.b16 %v286
      %v367 = vpack.c.b16 %v352, %v351
      %v368 = vpack.c.b16 %v354, %v353
      %v369 = vpack.c.b16 %v356, %v355
      %v370 = vpack.c.b16 %v358, %v357
      %v371 = vpack.c.b16 %v360, %v359
      %v372 = vpack.c.b16 %v362, %v361
      %v373 = vpack.c.b16 %v364, %v363
      %v374 = vpack.c.b16 %v366, %v365
      %383 = vmatprep.subr.bf16.mxu0 0
      %384 = vmatpush1.bf16.msra.mxu0 %v367
      %385 = vmatprep.subr.bf16.mxu0 0
      %386 = vmatpush1.bf16.msra.mxu0 %v368
      %387 = vmatprep.subr.bf16.mxu0 0
      %388 = vmatpush1.bf16.msra.mxu0 %v369
      %389 = vmatprep.subr.bf16.mxu0 0
      %390 = vmatpush1.bf16.msra.mxu0 %v370
      %391 = vmatprep.subr.bf16.mxu0 0
      %392 = vmatpush1.bf16.msra.mxu0 %v371
      %393 = vmatprep.subr.bf16.mxu0 0
      %394 = vmatpush1.bf16.msra.mxu0 %v372
      %395 = vmatprep.subr.bf16.mxu0 0
      %396 = vmatpush1.bf16.msra.mxu0 %v373
      %397 = vmatprep.subr.bf16.mxu0 0
      %398 = vmatpush1.bf16.msra.mxu0 %v374
      %399 = vmatprep.subr.bf16.mxu0 0
      %400 = vmatpush1.bf16.msra.mxu0 0
      %401 = vmatprep.subr.bf16.mxu0 0
      %402 = vmatpush1.bf16.msra.mxu0 0
      %403 = vmatprep.subr.bf16.mxu0 0
      %404 = vmatpush1.bf16.msra.mxu0 0
      %405 = vmatprep.subr.bf16.mxu0 0
      %406 = vmatpush1.bf16.msra.mxu0 0
      %407 = vmatprep.subr.bf16.mxu0 0
      %408 = vmatpush1.bf16.msra.mxu0 0
      %409 = vmatprep.subr.bf16.mxu0 0
      %410 = vmatpush1.bf16.msra.mxu0 0
      %411 = vmatprep.subr.bf16.mxu0 0
      %412 = vmatpush1.bf16.msra.mxu0 0
      %413 = vmatprep.subr.bf16.mxu0 0
      %414 = vmatpush1.bf16.msra.mxu0 0
      %415 = vmatprep.mubr.bf16.mxu0 0
      %416 = vmatmul.mubr.bf16.gmra.mrb[0].mxu0 %v319
      %v417 = vpop.f32.mrb[0].mxu0
      %v418 = vadd.f32 0.0, %v417
      %v419 = vpop.f32.mrb[0].mxu0
      %v420 = vpop.f32.mrb[0].mxu0
      %v421 = vadd.f32 0.0, %v420
      %v422 = vpop.f32.mrb[0].mxu0
      %423 = vmatprep.mubr.bf16.mxu0 0
      %424 = vmatmul.mubr.bf16.gmra.mrb[0].mxu0 %v320
      %v425 = vpop.f32.mrb[0].mxu0
      %v426 = vadd.f32 0.0, %v425
      %v427 = vpop.f32.mrb[0].mxu0
      %v428 = vpop.f32.mrb[0].mxu0
      %v429 = vadd.f32 0.0, %v428
      %v430 = vpop.f32.mrb[0].mxu0
      %431 = vmatprep.mubr.bf16.mxu0 0
      %432 = vmatmul.mubr.bf16.gmra.mrb[0].mxu0 %v321
      %v433 = vpop.f32.mrb[0].mxu0
      %v434 = vadd.f32 0.0, %v433
      %v435 = vpop.f32.mrb[0].mxu0
      %v436 = vpop.f32.mrb[0].mxu0
      %v437 = vadd.f32 0.0, %v436
      %v438 = vpop.f32.mrb[0].mxu0
      %439 = vmatprep.mubr.bf16.mxu0 0
      %440 = vmatmul.mubr.bf16.gmra.mrb[0].mxu0 %v322
      %v441 = vpop.f32.mrb[0].mxu0
      %v442 = vadd.f32 0.0, %v441
      %v443 = vpop.f32.mrb[0].mxu0
      %v444 = vpop.f32.mrb[0].mxu0
      %v445 = vadd.f32 0.0, %v444
      %v446 = vpop.f32.mrb[0].mxu0
      %447 = vmatprep.mubr.bf16.mxu0 0
      %448 = vmatmul.mubr.bf16.gmra.mrb[0].mxu0 %v323
      %v449 = vpop.f32.mrb[0].mxu0
      %v450 = vadd.f32 0.0, %v449
      %v451 = vpop.f32.mrb[0].mxu0
      %v452 = vpop.f32.mrb[0].mxu0
      %v453 = vadd.f32 0.0, %v452
      %v454 = vpop.f32.mrb[0].mxu0
      %455 = vmatprep.mubr.bf16.mxu0 0
      %456 = vmatmul.mubr.bf16.gmra.mrb[0].mxu0 %v324
      %v457 = vpop.f32.mrb[0].mxu0
      %v458 = vadd.f32 0.0, %v457
      %v459 = vpop.f32.mrb[0].mxu0
      %v460 = vpop.f32.mrb[0].mxu0
      %v461 = vadd.f32 0.0, %v460
      %v462 = vpop.f32.mrb[0].mxu0
      %463 = vmatprep.mubr.bf16.mxu0 0
      %464 = vmatmul.mubr.bf16.gmra.mrb[0].mxu0 %v325
      %v465 = vpop.f32.mrb[0].mxu0
      %v466 = vadd.f32 0.0, %v465
      %v467 = vpop.f32.mrb[0].mxu0
      %v468 = vpop.f32.mrb[0].mxu0
      %v469 = vadd.f32 0.0, %v468
      %v470 = vpop.f32.mrb[0].mxu0
      %471 = vmatprep.mubr.bf16.mxu0 0
      %472 = vmatmul.mubr.bf16.gmra.mrb[0].mxu0 %v326
      %v473 = vpop.f32.mrb[0].mxu0
      %v474 = vadd.f32 0.0, %v473
      %v475 = vpop.f32.mrb[0].mxu0
      %v476 = vpop.f32.mrb[0].mxu0
      %v477 = vadd.f32 0.0, %v476
      %v478 = vpop.f32.mrb[0].mxu0
      %479 = vdwg.mxu0
      %480 = vst [vmem:[%s244] sm:$0xff] %v418
      %481 = vst [vmem:[%s244 + $0x8] sm:$0xff] %v421
      %482 = vst [vmem:[%s244 + $0x10] sm:$0xff] %v426
      %483 = vst [vmem:[%s244 + $0x18] sm:$0xff] %v429
      %484 = vst [vmem:[%s244 + $0x20] sm:$0xff] %v434
      %485 = vst [vmem:[%s244 + $0x28] sm:$0xff] %v437
      %486 = vst [vmem:[%s244 + $0x30] sm:$0xff] %v442
      %487 = vst [vmem:[%s244 + $0x38] sm:$0xff] %v445
      %488 = vst [vmem:[%s244 + $0x40] sm:$0xff] %v450
      %489 = vst [vmem:[%s244 + $0x48] sm:$0xff] %v453
      %490 = vst [vmem:[%s244 + $0x50] sm:$0xff] %v458
      %491 = vst [vmem:[%s244 + $0x58] sm:$0xff] %v461
      %492 = vst [vmem:[%s244 + $0x60] sm:$0xff] %v466
      %493 = vst [vmem:[%s244 + $0x68] sm:$0xff] %v469
      %494 = vst [vmem:[%s244 + $0x70] sm:$0xff] %v474
      %495 = vst [vmem:[%s244 + $0x78] sm:$0xff] %v477
      %p496 = scmp.eq.s32.totalorder %s21, 0
      // Predicated region
      $region29: #{conv_block_forward.2} parent=27 // pred_check
        %p497 = pneg %p496
      $region30: #{conv_block_forward.2} parent=27 // pred_check_branch
        %499 = sbr.rel (%p497) target = $region32
      $region31: #{conv_block_forward.2} parent=27 // pred_region
        %500 = vst [vmem:[%s250] sm:$0x1] 0.0
        %501 = vst [vmem:[%s253] sm:$0x1] 0.0
      $region32: #{conv_block_forward.2} parent=27 // pred_fallthru
        _
      %v502 = vld [vmem:[%s250] sm:$0x1]
      %v503 = vadd.f32 %v418, %v421
      %v504 = vadd.f32 %v503, %v426
      %v505 = vadd.f32 %v504, %v429
      %v506 = vadd.f32 %v505, %v434
      %v507 = vadd.f32 %v506, %v437
      %v508 = vadd.f32 %v507, %v442
      %v509 = vadd.f32 %v508, %v445
      %v510 = vadd.f32 %v509, %v450
      %v511 = vadd.f32 %v510, %v453
      %v512 = vadd.f32 %v511, %v458
      %v513 = vadd.f32 %v512, %v461
      %v514 = vadd.f32 %v513, %v466
      %v515 = vadd.f32 %v514, %v469
      %v516 = vadd.f32 %v515, %v474
      %v517 = vadd.f32 %v516, %v477
      %v518 = vrot.slane %v517, 4
      %v519 = vadd.f32 %v517, %v518
      %v520 = vrot.slane %v519, 2
      %v521 = vadd.f32 %v519, %v520
      %v522 = vrot.slane %v521, 1
      %v523 = vadd.f32 %v521, %v522
      %v524 = vadd.f32 %v502, %v523
      %525 = vst [vmem:[%s250] sm:$0x1] %v524
      %v526 = vld [vmem:[%s253] sm:$0x1]
      %v527 = vmul.f32 %v418, %v418
      %v528 = vmul.f32 %v421, %v421
      %v529 = vmul.f32 %v426, %v426
      %v530 = vmul.f32 %v429, %v429
      %v531 = vmul.f32 %v434, %v434
      %v532 = vmul.f32 %v437, %v437
      %v533 = vmul.f32 %v442, %v442
      %v534 = vmul.f32 %v445, %v445
      %v535 = vmul.f32 %v450, %v450
      %v536 = vmul.f32 %v453, %v453
      %v537 = vmul.f32 %v458, %v458
      %v538 = vmul.f32 %v461, %v461
      %v539 = vmul.f32 %v466, %v466
      %v540 = vmul.f32 %v469, %v469
      %v541 = vmul.f32 %v474, %v474
      %v542 = vmul.f32 %v477, %v477
      %v543 = vadd.f32 %v527, %v528
      %v544 = vadd.f32 %v543, %v529
      %v545 = vadd.f32 %v544, %v530
      %v546 = vadd.f32 %v545, %v531
      %v547 = vadd.f32 %v546, %v532
      %v548 = vadd.f32 %v547, %v533
      %v549 = vadd.f32 %v548, %v534
      %v550 = vadd.f32 %v549, %v535
      %v551 = vadd.f32 %v550, %v536
      %v552 = vadd.f32 %v551, %v537
      %v553 = vadd.f32 %v552, %v538
      %v554 = vadd.f32 %v553, %v539
      %v555 = vadd.f32 %v554, %v540
      %v556 = vadd.f32 %v555, %v541
      %v557 = vadd.f32 %v556, %v542
      %v558 = vrot.slane %v557, 4
      %v559 = vadd.f32 %v557, %v558
      %v560 = vrot.slane %v559, 2
      %v561 = vadd.f32 %v559, %v560
      %v562 = vrot.slane %v561, 1
      %v563 = vadd.f32 %v561, %v562
      %v564 = vadd.f32 %v526, %v563
      %565 = vst [vmem:[%s253] sm:$0x1] %v564
      %s566 = smul.u32 %s20, 2
      %s567 = sadd.s32 %s566, %s21
      %s568 = smul.u32 16, %s567
      %p569 = scmp.lt.s32.totalorder %s568, 63
      %s570 = scalar_select %p569, %s568, 63
      %s571 = smul.addr %s570, 8
      %s572 = scalar_lea.vmem %s2, %s571
      %p573 = scmp.lt.s32.totalorder %s20, 1
      %s574 = scalar_select %p573, %s20, 1
      %s575 = scalar_lea.vmem %s3, %s574
      %p576 = scmp.lt.s32.totalorder %s20, 1
      %s577 = scalar_select %p576, %s20, 1
      %s578 = scalar_lea.vmem %s4, %s577
      // Predicated region
      $region33: #{conv_block_forward.2} parent=27 // pred_check
        %p579 = pneg %p101
      $region34: #{conv_block_forward.2} parent=27 // pred_check_branch
        %581 = sbr.rel (%p579) target = $region36
      $region35: #{conv_block_forward.2} parent=27 // pred_region
        %s582 = smul.u32 %s20, 2
        %s583 = sadd.s32 %s582, %s21
        %s584 = smul.u32 16, %s583
      $region36: #{conv_block_forward.2} parent=27 // pred_fallthru
        _
      // Predicated region
      $region37: #{conv_block_forward.2} parent=27 // pred_check
        %p585 = pneg %p127
      $region38: #{conv_block_forward.2} parent=27 // pred_check_branch
        %587 = sbr.rel (%p585) target = $region40
      $region39: #{conv_block_forward.2} parent=27 // pred_region
        _
      $region40: #{conv_block_forward.2} parent=27 // pred_fallthru
        _
      // Predicated region
      $region41: #{conv_block_forward.2} parent=27 // pred_check
        %p588 = pneg %p153
      $region42: #{conv_block_forward.2} parent=27 // pred_check_branch
        %590 = sbr.rel (%p588) target = $region44
      $region43: #{conv_block_forward.2} parent=27 // pred_region
        _
      $region44: #{conv_block_forward.2} parent=27 // pred_fallthru
        _
    $region28: #{conv_block_forward.2} parent=5 // pred_fallthru
      _
    %p591 = scmp.le.s32.totalorder 2, %s11
    // Predicated region
    $region45: #{conv_block_forward.2} parent=5 // pred_check
      %p592 = pneg %p591
    $region46: #{conv_block_forward.2} parent=5 // pred_check_branch
      %594 = sbr.rel (%p592) target = $region48
    $region47: #{conv_block_forward.2} parent=5 // pred_region
      %s595 = ssub.s32 %s11, 2
      // Predicated region
      $region49: #{conv_block_forward.2} parent=47 // pred_check
        %p596 = pneg %p107
      $region50: #{conv_block_forward.2} parent=47 // pred_check_branch
        %598 = sbr.rel (%p596) target = $region52
      $region51: #{conv_block_forward.2} parent=47 // pred_region
        %s599 = smul.u32 %s22, 2
        %s600 = sadd.s32 %s599, %s23
        %s601 = smul.u32 16, %s600
        %p602 = scmp.lt.s32.totalorder %s601, 63
        %s603 = scalar_select %p602, %s601, 63
        %s604 = smul.addr %s603, 8
        %s605 = scalar_lea.vmem %s2, %s604
      $region52: #{conv_block_forward.2} parent=47 // pred_fallthru
        _
      // Predicated region
      $region53: #{conv_block_forward.2} parent=47 // pred_check
        %p606 = pneg %p133
      $region54: #{conv_block_forward.2} parent=47 // pred_check_branch
        %608 = sbr.rel (%p606) target = $region56
      $region55: #{conv_block_forward.2} parent=47 // pred_region
        %p609 = scmp.lt.s32.totalorder %s22, 1
        %s610 = scalar_select %p609, %s22, 1
        %s611 = scalar_lea.vmem %s3, %s610
      $region56: #{conv_block_forward.2} parent=47 // pred_fallthru
        _
      // Predicated region
      $region57: #{conv_block_forward.2} parent=47 // pred_check
        %p612 = pneg %p159
      $region58: #{conv_block_forward.2} parent=47 // pred_check_branch
        %614 = sbr.rel (%p612) target = $region60
      $region59: #{conv_block_forward.2} parent=47 // pred_region
        %p615 = scmp.lt.s32.totalorder %s22, 1
        %s616 = scalar_select %p615, %s22, 1
        %s617 = scalar_lea.vmem %s4, %s616
      $region60: #{conv_block_forward.2} parent=47 // pred_fallthru
        _
    $region48: #{conv_block_forward.2} parent=5 // pred_fallthru
      _
  $region6: #{conv_block_forward.2} parent=0 // loop_footer
    %s15 = sadd.s32 1, %s11
  $region7: #{conv_block_forward.2} parent=0 // loop_footer_branch
    %10 = sbr.rel target = $region3
  $region8: #{conv_block_forward.2} parent=0 // loop_exit
    _

</llo_original>
